<compile_context>
chip_gen: v5e
topology: v5e:2x2
jax: 0.10.0
libtpu: 0.0.40
codegen_flags: <defaults>
</compile_context>

<pallas_src>
from functools import partial

import jax
import jax.numpy as jnp
from jax.experimental import pallas as pl
from jax.experimental.pallas import tpu as pltpu


def gat_kernel(h_ref, ht_ref, waug_ref, war_ref, bias_ref, out_ref,
               g_scr, el_scr, er_scr, *, n_hidden, tile_i, slope):
    """One (head, row-tile) grid step.

    h_ref    [N, Fin]      node features (resident)
    ht_ref   [Fin, N]      h transposed (resident; avoids in-kernel transpose)
    waug_ref [1, Fin, Fh+1] per-head [W_head | W_head @ a_l]
    war_ref  [1, 1, Fin]   per-head (W_head @ a_r)^T row
    bias_ref [1, T, N]     bf16 additive adjacency bias (0 / -1e9)
    out_ref  [1, T, Fh]    per-head output tile
    scratch: g_scr [N, Fh], el_scr [N, 1], er_scr [1, N]   (f32, per head)
    """
    i = pl.program_id(1)

    # ---- per-head init: one fused MXU pass produces g, e_l and e_r ----------
    @pl.when(i == 0)
    def _init():
        ga = jnp.dot(h_ref[...], waug_ref[0],
                     preferred_element_type=jnp.float32)          # [N, Fh+1]
        g_scr[...] = ga[:, :n_hidden]                              # [N, Fh]
        el_scr[...] = ga[:, n_hidden:n_hidden + 1]                 # [N, 1]
        # e_r as a lane-major row, straight off the MXU (no transpose):
        er_scr[...] = jnp.dot(war_ref[0], ht_ref[...],
                              preferred_element_type=jnp.float32)  # [1, N]

    # ---- attention logits for this row tile ---------------------------------
    row0 = pl.multiple_of(i * tile_i, tile_i)
    el_tile = el_scr[pl.ds(row0, tile_i), :]                       # [T, 1]
    e = el_tile + er_scr[...]                                      # [T, N]
    e = jnp.where(e >= 0, e, slope * e)                            # LeakyReLU
    e = e + bias_ref[0].astype(jnp.float32)                        # additive mask

    # ---- row softmax (exact: full neighbor axis per tile) -------------------
    e_max = jnp.max(e, axis=1, keepdims=True)
    p = jnp.exp(e - e_max)
    s = jnp.sum(p, axis=1, keepdims=True)
    a = p * pl.reciprocal(s, approx=True)                          # EUP, not VPU divide
    # TODO(synk): dropout on attention coefficients omitted (eval-mode identity).

    # ---- aggregate neighbors on the MXU --------------------------------------
    res = jnp.dot(a, g_scr[...], preferred_element_type=jnp.float32)  # [T, Fh]
    out_ref[0] = res.astype(out_ref.dtype)


def _pick_row_tile(n_nodes):
    """Largest multiple-of-16 row tile dividing N whose bf16 [T, N] slab stays ~2 MiB."""
    budget = 2 * 1024 * 1024
    for t in (1024, 512, 256, 128, 64, 32, 16):
        if n_nodes % t == 0 and t * n_nodes * 2 <= budget:
            return t
    return n_nodes  # small / awkward N: single full-height tile


def gat_forward(h, adj_mat, w, attn_w, *, n_heads, n_hidden, slope=0.2,
                is_concat=True):
    """h: [N, Fin]; adj_mat: [N|1, N|1, 1|H]; w: [H*Fh, Fin]; attn_w: [1, 2*Fh]."""
    h = jnp.asarray(h, jnp.float32)
    n_nodes, in_features = h.shape

    # --- fuse attention projections into the main weight (extra MXU columns) ---
    w_t = jnp.asarray(w, jnp.float32).T                                    # [Fin, H*Fh]
    w_heads = w_t.reshape(in_features, n_heads, n_hidden).transpose(1, 0, 2)  # [H,Fin,Fh]
    a_vec = jnp.asarray(attn_w, jnp.float32).reshape(-1)
    a_l, a_r = a_vec[:n_hidden], a_vec[n_hidden:]
    w_al = jnp.einsum('hif,f->hi', w_heads, a_l)[:, :, None]               # [H, Fin, 1]
    w_aug = jnp.concatenate([w_heads, w_al], axis=-1)                      # [H, Fin, Fh+1]
    w_ar = jnp.einsum('hif,f->hi', w_heads, a_r)[:, None, :]               # [H, 1, Fin]

    # --- adjacency -> compact bf16 additive bias (no H-fold replication) -------
    adj = jnp.asarray(adj_mat)
    adj_heads = adj.shape[2]
    adj = jnp.broadcast_to(adj, (n_nodes, n_nodes, adj_heads))
    bias = jnp.where(jnp.transpose(adj, (2, 0, 1)) == 0,
                     jnp.float32(-1e9), jnp.float32(0.0)).astype(jnp.bfloat16)

    tile_i = _pick_row_tile(n_nodes)
    n_row_tiles = n_nodes // tile_i

    if adj_heads == n_heads:
        bias_map = lambda hd, i: (hd, i, 0)
    else:  # shared adjacency: every head reuses the same [N, N] bias
        bias_map = lambda hd, i: (0, i, 0)

    kernel = partial(gat_kernel, n_hidden=n_hidden, tile_i=tile_i, slope=slope)
    grid_spec = pltpu.PrefetchScalarGridSpec(
        num_scalar_prefetch=0,
        grid=(n_heads, n_row_tiles),
        in_specs=[
            pl.BlockSpec((n_nodes, in_features), lambda hd, i: (0, 0)),      # h
            pl.BlockSpec((in_features, n_nodes), lambda hd, i: (0, 0)),      # h^T
            pl.BlockSpec((1, in_features, n_hidden + 1),
                         lambda hd, i: (hd, 0, 0)),                          # W_aug
            pl.BlockSpec((1, 1, in_features), lambda hd, i: (hd, 0, 0)),     # W a_r row
            pl.BlockSpec((1, tile_i, n_nodes), bias_map),                    # adj bias
        ],
        out_specs=pl.BlockSpec((1, tile_i, n_hidden), lambda hd, i: (hd, i, 0)),
        scratch_shapes=[
            pltpu.VMEM((n_nodes, n_hidden), jnp.float32),   # g (current head)
            pltpu.VMEM((n_nodes, 1), jnp.float32),          # e_l column
            pltpu.VMEM((1, n_nodes), jnp.float32),          # e_r row
        ],
    )

    out3 = pl.pallas_call(
        kernel,
        out_shape=jax.ShapeDtypeStruct((n_heads, n_nodes, n_hidden), jnp.float32),
        grid_spec=grid_spec,
        compiler_params=pltpu.CompilerParams(
            dimension_semantics=("parallel", "arbitrary"),
            vmem_limit_bytes=48 * 1024 * 1024),
    )(h, h.T, w_aug, w_ar, bias)

    if is_concat:
        return jnp.transpose(out3, (1, 0, 2)).reshape(n_nodes, n_heads * n_hidden)
    return jnp.mean(out3, axis=0)


def gat_reference(h, adj_mat, w, attn_w, *, n_heads, n_hidden, slope=0.2):
    """Pure-JAX reference mirroring the PyTorch forward (dropout = identity)."""
    n_nodes = h.shape[0]
    g = (h @ w.T).reshape(n_nodes, n_heads, n_hidden)
    a_vec = attn_w[0]
    al, ar = a_vec[:n_hidden], a_vec[n_hidden:]
    el = jnp.einsum('ihf,f->ih', g, al)
    er = jnp.einsum('jhf,f->jh', g, ar)
    e = el[:, None, :] + er[None, :, :]                   # [N, N, H]
    e = jnp.where(e >= 0, e, slope * e)
    adj = jnp.broadcast_to(adj_mat, (n_nodes, n_nodes, n_heads))
    e = jnp.where(adj == 0, -1e9, e)
    a = jax.nn.softmax(e, axis=1)
    attn_res = jnp.einsum('ijh,jhf->ihf', a, g)
    return attn_res.reshape(n_nodes, n_heads * n_hidden)


if __name__ == "__main__":
    # module config: in_features=32, out_features=32, n_heads=2, is_concat=True
    in_features = 32
    out_features = 32
    n_heads = 2
    n_hidden = out_features // n_heads          # 16
    n_nodes = 8

    key = jax.random.PRNGKey(0)
    k_h, k_w, k_a, k_adj = jax.random.split(key, 4)

    h = jax.random.normal(k_h, (n_nodes, in_features), jnp.float32)
    # linear.weight: [n_hidden * n_heads, in_features]
    w = jax.random.normal(k_w, (n_hidden * n_heads, in_features), jnp.float32) * 0.1
    # attn.weight: [1, 2 * n_hidden]
    attn_w = jax.random.normal(k_a, (1, 2 * n_hidden), jnp.float32) * 0.1
    # adjacency [N, N, 1] with self-loops (every row has >= 1 neighbor)
    adj = (jax.random.uniform(k_adj, (n_nodes, n_nodes, 1)) > 0.5).astype(jnp.float32)
    adj = jnp.maximum(adj, jnp.eye(n_nodes, dtype=jnp.float32)[:, :, None])

    out = gat_forward(h, adj, w, attn_w, n_heads=n_heads, n_hidden=n_hidden)
    out = jax.block_until_ready(out)

    ref = gat_reference(h, adj, w, attn_w, n_heads=n_heads, n_hidden=n_hidden)
    assert out.shape == (n_nodes, out_features)
    # tolerance accounts for pl.reciprocal(approx=True) in the softmax denominator
    max_err = float(jnp.max(jnp.abs(out - ref)))
    assert jnp.allclose(out, ref, atol=2e-3, rtol=2e-3), f"mismatch vs reference ({max_err})"

    print("KERNEL_OK")
</pallas_src>

<mosaic_0001>
module attributes {stable_mosaic.version = 11 : i64} {
  func.func @gat_kernel(%arg0: i32, %arg1: i32, %arg2: memref<8x32xf32, #tpu.memory_space<vmem>>, %arg3: memref<32x8xf32, #tpu.memory_space<vmem>>, %arg4: memref<1x32x17xf32, #tpu.memory_space<vmem>>, %arg5: memref<1x1x32xf32, #tpu.memory_space<vmem>>, %arg6: memref<1x8x8xbf16, #tpu.memory_space<vmem>>, %arg7: memref<1x8x16xf32, #tpu.memory_space<vmem>>, %arg8: memref<8x16xf32, #tpu.memory_space<vmem>>, %arg9: memref<8x1xf32, #tpu.memory_space<vmem>>, %arg10: memref<1x8xf32, #tpu.memory_space<vmem>>) attributes {dimension_semantics = [#tpu.dimension_semantics<parallel>, #tpu.dimension_semantics<arbitrary>], iteration_bounds = array<i64: 2, 1>, scalar_prefetch = 0 : i64, scratch_operands = 3 : i64, tpu.core_type = #tpu.core_type<tc>, window_params = [{pipeline_mode = #tpu.pipeline_mode<synchronous>, transform_indices = @transform_0, window_bounds = array<i64: 8, 32>}, {pipeline_mode = #tpu.pipeline_mode<synchronous>, transform_indices = @transform_1, window_bounds = array<i64: 32, 8>}, {transform_indices = @transform_2, window_bounds = array<i64: 1, 32, 17>}, {transform_indices = @transform_3, window_bounds = array<i64: 1, 1, 32>}, {transform_indices = @transform_4, window_bounds = array<i64: 1, 8, 8>}, {transform_indices = @transform_5, window_bounds = array<i64: 1, 8, 16>}]} {
    %c0_i32 = arith.constant 0 : i32
    %0 = arith.cmpi eq, %arg1, %c0_i32 : i32
    %1 = arith.extui %0 : i1 to i32
    %c0_i32_0 = arith.constant 0 : i32
    %2 = arith.cmpi ne, %1, %c0_i32_0 : i32
    scf.if %2 {
      %c0_15 = arith.constant 0 : index
      %c0_16 = arith.constant 0 : index
      %35 = vector.load %arg2[%c0_15, %c0_16] : memref<8x32xf32, #tpu.memory_space<vmem>>, vector<8x32xf32>
      %c0_17 = arith.constant 0 : index
      %c0_18 = arith.constant 0 : index
      %c0_19 = arith.constant 0 : index
      %36 = vector.load %arg4[%c0_17, %c0_18, %c0_19] : memref<1x32x17xf32, #tpu.memory_space<vmem>>, vector<1x32x17xf32>
      %37 = vector.shape_cast %36 : vector<1x32x17xf32> to vector<32x17xf32>
      %cst_20 = arith.constant dense<0.000000e+00> : vector<8x17xf32>
      %38 = tpu.matmul %35, %37, %cst_20 {dimension_numbers = #tpu.dot_dimension_numbers<[1], [0], [0], [1], [0, 0, 1, 1], [], []>} : vector<8x32xf32>, vector<32x17xf32>, vector<8x17xf32> -> vector<8x17xf32>
      %39 = vector.extract_strided_slice %38 {offsets = [0, 0], sizes = [8, 16], strides = [1, 1]} : vector<8x17xf32> to vector<8x16xf32>
      %c0_21 = arith.constant 0 : index
      %c0_22 = arith.constant 0 : index
      %40 = vector.load %arg8[%c0_21, %c0_22] : memref<8x16xf32, #tpu.memory_space<vmem>>, vector<8x16xf32>
      tpu.vector_store %arg8[%c0_21, %c0_22], %39 {strides = array<i32>} : memref<8x16xf32, #tpu.memory_space<vmem>>, vector<8x16xf32>,
      %41 = vector.extract_strided_slice %38 {offsets = [0, 16], sizes = [8, 1], strides = [1, 1]} : vector<8x17xf32> to vector<8x1xf32>
      %c0_23 = arith.constant 0 : index
      %c0_24 = arith.constant 0 : index
      %42 = vector.load %arg9[%c0_23, %c0_24] : memref<8x1xf32, #tpu.memory_space<vmem>>, vector<8x1xf32>
      tpu.vector_store %arg9[%c0_23, %c0_24], %41 {strides = array<i32>} : memref<8x1xf32, #tpu.memory_space<vmem>>, vector<8x1xf32>,
      %c0_25 = arith.constant 0 : index
      %c0_26 = arith.constant 0 : index
      %c0_27 = arith.constant 0 : index
      %43 = vector.load %arg5[%c0_25, %c0_26, %c0_27] : memref<1x1x32xf32, #tpu.memory_space<vmem>>, vector<1x1x32xf32>
      %44 = vector.shape_cast %43 : vector<1x1x32xf32> to vector<1x32xf32>
      %c0_28 = arith.constant 0 : index
      %c0_29 = arith.constant 0 : index
      %45 = vector.load %arg3[%c0_28, %c0_29] : memref<32x8xf32, #tpu.memory_space<vmem>>, vector<32x8xf32>
      %cst_30 = arith.constant dense<0.000000e+00> : vector<1x8xf32>
      %46 = tpu.matmul %44, %45, %cst_30 {dimension_numbers = #tpu.dot_dimension_numbers<[1], [0], [0], [1], [0, 0, 1, 1], [], []>} : vector<1x32xf32>, vector<32x8xf32>, vector<1x8xf32> -> vector<1x8xf32>
      %c0_31 = arith.constant 0 : index
      %c0_32 = arith.constant 0 : index
      %47 = vector.load %arg10[%c0_31, %c0_32] : memref<1x8xf32, #tpu.memory_space<vmem>>, vector<1x8xf32>
      tpu.vector_store %arg10[%c0_31, %c0_32], %46 {strides = array<i32>} : memref<1x8xf32, #tpu.memory_space<vmem>>, vector<1x8xf32>,
    } else {
    }
    %c8_i32 = arith.constant 8 : i32
    %3 = arith.muli %arg1, %c8_i32 : i32
    %4 = tpu.assume_multiple %3, 8 : i32
    %5 = arith.index_cast %4 : i32 to index
    %c0 = arith.constant 0 : index
    %6 = vector.load %arg9[%5, %c0] : memref<8x1xf32, #tpu.memory_space<vmem>>, vector<8x1xf32>
    %c0_1 = arith.constant 0 : index
    %c0_2 = arith.constant 0 : index
    %7 = vector.load %arg10[%c0_1, %c0_2] : memref<1x8xf32, #tpu.memory_space<vmem>>, vector<1x8xf32>
    %8 = vector.broadcast %6 : vector<8x1xf32> to vector<8x8xf32>
    %9 = vector.broadcast %7 : vector<1x8xf32> to vector<8x8xf32>
    %10 = arith.addf %8, %9 : vector<8x8xf32>
    %cst = arith.constant 0.000000e+00 : f32
    %11 = vector.broadcast %cst : f32 to vector<8x8xf32>
    %12 = arith.cmpf oge, %10, %11 : vector<8x8xf32>
    %cst_3 = arith.constant 2.000000e-01 : f32
    %13 = vector.broadcast %cst_3 : f32 to vector<8x8xf32>
    %14 = arith.mulf %13, %10 : vector<8x8xf32>
    %15 = arith.select %12, %10, %14 : vector<8x8xi1>, vector<8x8xf32>
    %c0_4 = arith.constant 0 : index
    %c0_5 = arith.constant 0 : index
    %c0_6 = arith.constant 0 : index
    %16 = vector.load %arg6[%c0_4, %c0_5, %c0_6] : memref<1x8x8xbf16, #tpu.memory_space<vmem>>, vector<1x8x8xbf16>
    %17 = vector.shape_cast %16 : vector<1x8x8xbf16> to vector<8x8xbf16>
    %18 = arith.extf %17 : vector<8x8xbf16> to vector<8x8xf32>
    %19 = arith.addf %15, %18 : vector<8x8xf32>
    %cst_7 = arith.constant dense<0xFF800000> : vector<8xf32>
    %20 = vector.multi_reduction <maximumf>, %19, %cst_7 [1] : vector<8x8xf32> to vector<8xf32>
    %21 = vector.shape_cast %20 : vector<8xf32> to vector<8x1xf32>
    %22 = vector.broadcast %21 : vector<8x1xf32> to vector<8x8xf32>
    %23 = arith.subf %19, %22 : vector<8x8xf32>
    %24 = math.exp %23 : vector<8x8xf32>
    %cst_8 = arith.constant dense<0.000000e+00> : vector<8xf32>
    %25 = vector.multi_reduction <add>, %24, %cst_8 [1] : vector<8x8xf32> to vector<8xf32>
    %26 = vector.shape_cast %25 : vector<8xf32> to vector<8x1xf32>
    %27 = tpu.reciprocal %26 {approx = true} : vector<8x1xf32> -> vector<8x1xf32>
    %28 = vector.broadcast %27 : vector<8x1xf32> to vector<8x8xf32>
    %29 = arith.mulf %24, %28 : vector<8x8xf32>
    %c0_9 = arith.constant 0 : index
    %c0_10 = arith.constant 0 : index
    %30 = vector.load %arg8[%c0_9, %c0_10] : memref<8x16xf32, #tpu.memory_space<vmem>>, vector<8x16xf32>
    %cst_11 = arith.constant dense<0.000000e+00> : vector<8x16xf32>
    %31 = tpu.matmul %29, %30, %cst_11 {dimension_numbers = #tpu.dot_dimension_numbers<[1], [0], [0], [1], [0, 0, 1, 1], [], []>} : vector<8x8xf32>, vector<8x16xf32>, vector<8x16xf32> -> vector<8x16xf32>
    %c0_12 = arith.constant 0 : index
    %c0_13 = arith.constant 0 : index
    %c0_14 = arith.constant 0 : index
    %32 = vector.load %arg7[%c0_12, %c0_13, %c0_14] : memref<1x8x16xf32, #tpu.memory_space<vmem>>, vector<1x8x16xf32>
    %33 = vector.shape_cast %32 : vector<1x8x16xf32> to vector<8x16xf32>
    %34 = vector.shape_cast %31 : vector<8x16xf32> to vector<1x8x16xf32>
    tpu.vector_store %arg7[%c0_12, %c0_13, %c0_14], %34 {strides = array<i32>} : memref<1x8x16xf32, #tpu.memory_space<vmem>>, vector<1x8x16xf32>,
    return
  }
  func.func @transform_0(%arg0: i32, %arg1: i32) -> (i32, i32) {
    %c0_i32 = arith.constant 0 : i32
    %c0_i32_0 = arith.constant 0 : i32
    %c0_i32_1 = arith.constant 0 : i32
    return %c0_i32, %c0_i32_0 : i32, i32
  }
  func.func @transform_1(%arg0: i32, %arg1: i32) -> (i32, i32) {
    %c0_i32 = arith.constant 0 : i32
    %c0_i32_0 = arith.constant 0 : i32
    %c0_i32_1 = arith.constant 0 : i32
    return %c0_i32, %c0_i32_0 : i32, i32
  }
  func.func @transform_2(%arg0: i32, %arg1: i32) -> (i32, i32, i32) {
    %c0_i32 = arith.constant 0 : i32
    %c0_i32_0 = arith.constant 0 : i32
    %c0_i32_1 = arith.constant 0 : i32
    return %arg0, %c0_i32, %c0_i32_0 : i32, i32, i32
  }
  func.func @transform_3(%arg0: i32, %arg1: i32) -> (i32, i32, i32) {
    %c0_i32 = arith.constant 0 : i32
    %c0_i32_0 = arith.constant 0 : i32
    %c0_i32_1 = arith.constant 0 : i32
    return %arg0, %c0_i32, %c0_i32_0 : i32, i32, i32
  }
  func.func @transform_4(%arg0: i32, %arg1: i32) -> (i32, i32, i32) {
    %c0_i32 = arith.constant 0 : i32
    %c0_i32_0 = arith.constant 0 : i32
    %c0_i32_1 = arith.constant 0 : i32
    return %c0_i32, %arg1, %c0_i32_0 : i32, i32, i32
  }
  func.func @transform_5(%arg0: i32, %arg1: i32) -> (i32, i32, i32) {
    %c0_i32 = arith.constant 0 : i32
    %c0_i32_0 = arith.constant 0 : i32
    return %arg0, %arg1, %c0_i32 : i32, i32, i32
  }
}

</mosaic_0001>

<llo_original>
// kernel: tpu_custom_call.1
$region0: #{tpu_custom_call.1}
  #allocation0 [shape = 'u32[]', space=smem, size = 0x4, offset = 0x4, fixed_abs, tag = 'smem constant byte address 0x4 - core index']
  #allocation1 [shape = 'u32[72,128]{1,0:T(1,128)}', space=vmem, size = 0x9000, scoped, tag = 'internal scratch']
  #allocation2 [shape = 'f32[8,16]{1,0:T(8,128)}', space=vmem, size = 0x1000, scoped, tag = 'scratch operand']
  #allocation3 [shape = 'f32[8,1]{1,0:T(8,128)}', space=vmem, size = 0x1000, scoped, tag = 'scratch operand']
  #allocation4 [shape = 'f32[1,8]{1,0:T(1,128)}', space=vmem, size = 0x200, scoped, tag = 'scratch operand']
  %s0 = inlined_call_operand.vmem [shape: f32[8,32], index: 0, kind: input, shape index: {}]
  %s1 = inlined_call_operand.vmem [shape: f32[32,8], index: 1, kind: input, shape index: {}]
  %s2 = inlined_call_operand.vmem [shape: f32[2,32,17], index: 2, kind: input, shape index: {}]
  %s3 = inlined_call_operand.vmem [shape: f32[2,1,32], index: 3, kind: input, shape index: {}]
  %s4 = inlined_call_operand.vmem [shape: bf16[1,8,8], index: 4, kind: input, shape index: {}]
  %s5 = inlined_call_operand.hbm [shape: f32[2,8,16], index: 5, kind: output, shape index: {}]
  %s6 = sld [smem:[#allocation0]]
  $region57: #{tpu_custom_call.1} parent=0
    _
  %s8 = ssub.s32 1, %s6
  %s9 = scalar_select 0, %s8, %s6
  $region1: #{tpu_custom_call.1} parent=0
    #allocation5 [shape = 'u8[8192]{0}', space=vmem, size = 0x2000, scoped, tag = 'output window, operand 0']
    #allocation6 [shape = 's32[2]{0}', space=sflag, size = 0x8, scoped, tag = 'scoped memory for tpu_custom_call.1']
    %10 = vsyncpa [#allocation6], 0
    %s11 = scalar_lea.sflag [#allocation6], 1
    %12 = vsyncpa %s11, 0
    loop: start=0, step=1, limit=4
    $region2: #{tpu_custom_call.1} parent=1 // loop_pre_header
      _
    $region3: #{tpu_custom_call.1} parent=1 // loop_header
      %s14 = sphi 0, %s18
      %p15 = scmp.ge.s32.totalorder %s14, 4
      %s21 = sphi 0, %s33
      %s22 = sphi 0, %s29
      %s23 = sphi 0, %s21
      %s24 = sphi 0, %s22
      %s25 = sphi 0, %s23
      %s26 = sphi 0, %s24
      %s34 = sphi 0, %s34
      %s36 = sphi 0, %s34
      %s37 = sphi 0, %s36
      %s51 = sphi 0, %s37
      %s55 = sphi 0, %s55
      %s57 = sphi 0, %s55
      %s58 = sphi 0, %s57
      %s72 = sphi 0, %s58
      %s78 = sphi 0, %s80
      %s81 = sphi 0, %s78
      %s82 = sphi 0, %s81
      %s98 = sphi 0, %s82
      %s104 = sphi 0, %s106
      %s107 = sphi 0, %s104
      %s108 = sphi 0, %s107
      %s124 = sphi 0, %s108
      %s130 = sphi 0, %s132
      %s133 = sphi 0, %s130
      %s134 = sphi 0, %s133
      %s150 = sphi 0, %s134
      %s158 = sphi 0, %s160
      %s161 = sphi 0, %s158
      %s162 = sphi 0, %s161
      %s178 = sphi 0, %s162
    $region4: #{tpu_custom_call.1} parent=1 // loop_header_branch
      %17 = sbr.rel (%p15) target = $region8
    $region5: #{tpu_custom_call.1} parent=1 // loop_body
      %s19 = ssub.s32 %s14, 1
      %s20 = ssub.s32 %s14, 2
      %s27 = sadd.s32 1, %s22
      %p28 = scmp.ge.s32.totalorder %s27, 1
      %s29 = scalar_select %p28, 0, %s27
      %s30 = sadd.s32 1, %s21
      %s31 = scalar_select %p28, %s30, %s21
      %p32 = scmp.ge.s32.totalorder %s31, 2
      %s33 = scalar_select %p32, 0, %s31
      %s35 = sadd.s32 %s34, 1
      %p38 = scmp.eq.s32.totalorder %s14, 1
      %p39 = scmp.ne.s32.totalorder %s34, %s36
      %p40 = scmp.eq.s32.totalorder %s14, 0
      %p41 = por %p39, %p40
      %p42 = scmp.ne.s32.totalorder %s34, %s36
      %p43 = scmp.eq.s32.totalorder %s19, 1
      %p44 = por %p42, %p43
      %p45 = scmp.ne.s32.totalorder %s36, %s37
      %p46 = scmp.eq.s32.totalorder %s19, 0
      %p47 = por %p45, %p46
      %p48 = scmp.ne.s32.totalorder %s36, %s37
      %p49 = scmp.eq.s32.totalorder %s20, 1
      %p50 = por %p48, %p49
      %p52 = scmp.ne.s32.totalorder %s37, %s51
      %p53 = scmp.eq.s32.totalorder %s20, 0
      %p54 = por %p52, %p53
      %s56 = sadd.s32 %s55, 1
      %p59 = scmp.eq.s32.totalorder %s14, 1
      %p60 = scmp.ne.s32.totalorder %s55, %s57
      %p61 = scmp.eq.s32.totalorder %s14, 0
      %p62 = por %p60, %p61
      %p63 = scmp.ne.s32.totalorder %s55, %s57
      %p64 = scmp.eq.s32.totalorder %s19, 1
      %p65 = por %p63, %p64
      %p66 = scmp.ne.s32.totalorder %s57, %s58
      %p67 = scmp.eq.s32.totalorder %s19, 0
      %p68 = por %p66, %p67
      %p69 = scmp.ne.s32.totalorder %s57, %s58
      %p70 = scmp.eq.s32.totalorder %s20, 1
      %p71 = por %p69, %p70
      %p73 = scmp.ne.s32.totalorder %s58, %s72
      %p74 = scmp.eq.s32.totalorder %s20, 0
      %p75 = por %p73, %p74
      %s76 = ssub.s32 %s21, %s33
      %p77 = scmp.eq.s32.totalorder %s76, 0
      %s79 = sadd.s32 %s78, 1
      %s80 = scalar_select %p77, %s78, %s79
      %p83 = pneg %p77
      %p84 = scmp.eq.s32.totalorder %s14, 1
      %p85 = por %p83, %p84
      %p86 = scmp.ne.s32.totalorder %s78, %s81
      %p87 = scmp.eq.s32.totalorder %s14, 0
      %p88 = por %p86, %p87
      %p89 = scmp.ne.s32.totalorder %s78, %s81
      %p90 = scmp.eq.s32.totalorder %s19, 1
      %p91 = por %p89, %p90
      %p92 = scmp.ne.s32.totalorder %s81, %s82
      %p93 = scmp.eq.s32.totalorder %s19, 0
      %p94 = por %p92, %p93
      %p95 = scmp.ne.s32.totalorder %s81, %s82
      %p96 = scmp.eq.s32.totalorder %s20, 1
      %p97 = por %p95, %p96
      %p99 = scmp.ne.s32.totalorder %s82, %s98
      %p100 = scmp.eq.s32.totalorder %s20, 0
      %p101 = por %p99, %p100
      %s102 = ssub.s32 %s21, %s33
      %p103 = scmp.eq.s32.totalorder %s102, 0
      %s105 = sadd.s32 %s104, 1
      %s106 = scalar_select %p103, %s104, %s105
      %p109 = pneg %p103
      %p110 = scmp.eq.s32.totalorder %s14, 1
      %p111 = por %p109, %p110
      %p112 = scmp.ne.s32.totalorder %s104, %s107
      %p113 = scmp.eq.s32.totalorder %s14, 0
      %p114 = por %p112, %p113
      %p115 = scmp.ne.s32.totalorder %s104, %s107
      %p116 = scmp.eq.s32.totalorder %s19, 1
      %p117 = por %p115, %p116
      %p118 = scmp.ne.s32.totalorder %s107, %s108
      %p119 = scmp.eq.s32.totalorder %s19, 0
      %p120 = por %p118, %p119
      %p121 = scmp.ne.s32.totalorder %s107, %s108
      %p122 = scmp.eq.s32.totalorder %s20, 1
      %p123 = por %p121, %p122
      %p125 = scmp.ne.s32.totalorder %s108, %s124
      %p126 = scmp.eq.s32.totalorder %s20, 0
      %p127 = por %p125, %p126
      %s128 = ssub.s32 %s22, %s29
      %p129 = scmp.eq.s32.totalorder %s128, 0
      %s131 = sadd.s32 %s130, 1
      %s132 = scalar_select %p129, %s130, %s131
      %p135 = pneg %p129
      %p136 = scmp.eq.s32.totalorder %s14, 1
      %p137 = por %p135, %p136
      %p138 = scmp.ne.s32.totalorder %s130, %s133
      %p139 = scmp.eq.s32.totalorder %s14, 0
      %p140 = por %p138, %p139
      %p141 = scmp.ne.s32.totalorder %s130, %s133
      %p142 = scmp.eq.s32.totalorder %s19, 1
      %p143 = por %p141, %p142
      %p144 = scmp.ne.s32.totalorder %s133, %s134
      %p145 = scmp.eq.s32.totalorder %s19, 0
      %p146 = por %p144, %p145
      %p147 = scmp.ne.s32.totalorder %s133, %s134
      %p148 = scmp.eq.s32.totalorder %s20, 1
      %p149 = por %p147, %p148
      %p151 = scmp.ne.s32.totalorder %s134, %s150
      %p152 = scmp.eq.s32.totalorder %s20, 0
      %p153 = por %p151, %p152
      %s154 = ssub.s32 %s21, %s33
      %s155 = ssub.s32 %s22, %s29
      %s156 = sor.u32 %s154, %s155
      %p157 = scmp.eq.s32.totalorder %s156, 0
      %s159 = sadd.s32 %s158, 1
      %s160 = scalar_select %p157, %s158, %s159
      %p163 = pneg %p157
      %p164 = scmp.eq.s32.totalorder %s14, 1
      %p165 = por %p163, %p164
      %p166 = scmp.ne.s32.totalorder %s158, %s161
      %p167 = scmp.eq.s32.totalorder %s14, 0
      %p168 = por %p166, %p167
      %p169 = scmp.ne.s32.totalorder %s158, %s161
      %p170 = scmp.eq.s32.totalorder %s19, 1
      %p171 = por %p169, %p170
      %p172 = scmp.ne.s32.totalorder %s161, %s162
      %p173 = scmp.eq.s32.totalorder %s19, 0
      %p174 = por %p172, %p173
      %p175 = scmp.ne.s32.totalorder %s161, %s162
      %p176 = scmp.eq.s32.totalorder %s20, 1
      %p177 = por %p175, %p176
      %p179 = scmp.ne.s32.totalorder %s162, %s178
      %p180 = scmp.eq.s32.totalorder %s20, 0
      %p181 = por %p179, %p180
      %p182 = scmp.le.s32.totalorder 1, %s14
      %p183 = scmp.lt.s32.totalorder %s14, 3
      %p184 = pnand %p182, %p183
      %p185 = pneg %p184
      // Predicated region
      $region9: #{tpu_custom_call.1} parent=5 // pred_check
        _
      $region10: #{tpu_custom_call.1} parent=5 // pred_check_branch
        %187 = sbr.rel (%p184) target = $region12
      $region11: #{tpu_custom_call.1} parent=5 // pred_region
        %s188 = ssub.s32 %s14, 1
        // Predicated region
        $region13: #{tpu_custom_call.1} parent=11 // pred_check
          %p189 = pneg %p47
        $region14: #{tpu_custom_call.1} parent=11 // pred_check_branch
          %191 = sbr.rel (%p189) target = $region16
        $region15: #{tpu_custom_call.1} parent=11 // pred_region
          _
        $region16: #{tpu_custom_call.1} parent=11 // pred_fallthru
          _
        // Predicated region
        $region17: #{tpu_custom_call.1} parent=11 // pred_check
          %p192 = pneg %p68
        $region18: #{tpu_custom_call.1} parent=11 // pred_check_branch
          %194 = sbr.rel (%p192) target = $region20
        $region19: #{tpu_custom_call.1} parent=11 // pred_region
          _
        $region20: #{tpu_custom_call.1} parent=11 // pred_fallthru
          _
        // Predicated region
        $region21: #{tpu_custom_call.1} parent=11 // pred_check
          %p195 = pneg %p146
        $region22: #{tpu_custom_call.1} parent=11 // pred_check_branch
          %197 = sbr.rel (%p195) target = $region24
        $region23: #{tpu_custom_call.1} parent=11 // pred_region
          %p198 = scmp.lt.s32.totalorder %s24, 0
          %s199 = scalar_select %p198, %s24, 0
          %s200 = smul.addr %s199, 4
          %s201 = scalar_lea.vmem %s4, %s200
        $region24: #{tpu_custom_call.1} parent=11 // pred_fallthru
          _
      $region12: #{tpu_custom_call.1} parent=5 // pred_fallthru
        _
      %p202 = scmp.lt.s32.totalorder %s14, 2
      // Predicated region
      $region25: #{tpu_custom_call.1} parent=5 // pred_check
        %p203 = pneg %p202
      $region26: #{tpu_custom_call.1} parent=5 // pred_check_branch
        %205 = sbr.rel (%p203) target = $region28
      $region27: #{tpu_custom_call.1} parent=5 // pred_region
        // Predicated region
        $region29: #{tpu_custom_call.1} parent=27 // pred_check
          %p206 = pneg %p88
        $region30: #{tpu_custom_call.1} parent=27 // pred_check_branch
          %208 = sbr.rel (%p206) target = $region32
        $region31: #{tpu_custom_call.1} parent=27 // pred_region
          %p209 = scmp.lt.s32.totalorder %s21, 1
          %s210 = scalar_select %p209, %s21, 1
          %s211 = smul.addr %s210, 4
          %s212 = smul.addr %s211, 8
          %s213 = scalar_lea.vmem %s2, %s212
        $region32: #{tpu_custom_call.1} parent=27 // pred_fallthru
          _
        // Predicated region
        $region33: #{tpu_custom_call.1} parent=27 // pred_check
          %p214 = pneg %p114
        $region34: #{tpu_custom_call.1} parent=27 // pred_check_branch
          %216 = sbr.rel (%p214) target = $region36
        $region35: #{tpu_custom_call.1} parent=27 // pred_region
          %p217 = scmp.lt.s32.totalorder %s21, 1
          %s218 = scalar_select %p217, %s21, 1
          %s219 = scalar_lea.vmem %s3, %s218
        $region36: #{tpu_custom_call.1} parent=27 // pred_fallthru
          _
      $region28: #{tpu_custom_call.1} parent=5 // pred_fallthru
        _
      %p220 = scmp.le.s32.totalorder 1, %s14
      %p221 = scmp.lt.s32.totalorder %s14, 3
      %p222 = pnand %p220, %p221
      %p223 = pneg %p222
      // Predicated region
      $region37: #{tpu_custom_call.1} parent=5 // pred_check
        _
      $region38: #{tpu_custom_call.1} parent=5 // pred_check_branch
        %225 = sbr.rel (%p222) target = $region40
      $region39: #{tpu_custom_call.1} parent=5 // pred_region
        %s226 = ssub.s32 %s14, 1
        %p227 = pneg %p47
        %p228 = pneg %p44
        %p229 = pneg %p68
        %p230 = pneg %p65
        %p231 = scmp.lt.s32.totalorder %s23, 1
        %s232 = scalar_select %p231, %s23, 1
        %s233 = smul.addr %s232, 4
        %s234 = smul.addr %s233, 8
        %s235 = scalar_lea.vmem %s2, %s234
        %p236 = pneg %p94
        %p237 = pneg %p91
        %p238 = scmp.lt.s32.totalorder %s23, 1
        %s239 = scalar_select %p238, %s23, 1
        %s240 = scalar_lea.vmem %s3, %s239
        %p241 = pneg %p120
        %p242 = pneg %p117
        %p243 = scmp.lt.s32.totalorder %s24, 0
        %s244 = scalar_select %p243, %s24, 0
        %s245 = smul.addr %s244, 4
        %s246 = scalar_lea.vmem %s4, %s245
        %p247 = pneg %p146
        %p248 = pneg %p143
        %p249 = pneg %p174
        %p250 = pneg %p171
        %s251 = sand.u32 %s161, 1
        %s252 = scalar_lea.sflag [#allocation6], %s251
        %s253 = sand.u32 %s161, 1
        %s254 = smul.addr %s253, 8
        %s255 = scalar_lea.vmem [#allocation5], %s254
        %p256 = scmp.lt.s32.totalorder %s23, 1
        %s257 = scalar_select %p256, %s23, 1
        %s258 = smul.addr %s257, 4
        %s259 = smul.addr %s258, 8
        %s260 = scalar_lea.vmem %s2, %s259
        %p261 = scmp.lt.s32.totalorder %s23, 1
        %s262 = scalar_select %p261, %s23, 1
        %s263 = scalar_lea.vmem %s3, %s262
        %p264 = scmp.lt.s32.totalorder %s24, 0
        %s265 = scalar_select %p264, %s24, 0
        %s266 = smul.addr %s265, 4
        %s267 = scalar_lea.vmem %s4, %s266
        %p268 = scmp.eq.s32.totalorder %s24, 0
        // Predicated region
        $region41: #{tpu_custom_call.1} parent=39 // pred_check
          %p269 = pneg %p268
        $region42: #{tpu_custom_call.1} parent=39 // pred_check_branch
          %271 = sbr.rel (%p269) target = $region44
        $region43: #{tpu_custom_call.1} parent=39 // pred_region
          %v272 = vld [vmem:[%s0] sm:$0xff]
          %v273 = vld [vmem:[%s260] sm:$0xff]
          %v274 = vld [vmem:[%s260 + $0x8] sm:$0xff]
          %v275 = vld [vmem:[%s260 + $0x10] sm:$0xff]
          %v276 = vld [vmem:[%s260 + $0x18] sm:$0xff]
          %vm277 = vcmask 261120
          %v279 = vsel %vm277, %v272, 0
          %281 = vmatpush.msra.mxu0 0.0
          %282 = vmatpush.msra.mxu0 0.0
          %283 = vmatpush.msra.mxu0 0.0
          %284 = vmatpush.msra.mxu0 0.0
          %285 = vmatpush.msra.mxu0 0.0
          %286 = vmatpush.msra.mxu0 0.0
          %287 = vmatpush.msra.mxu0 0.0
          %288 = vmatpush.msra.mxu0 0.0
          %289 = vmatpush.msra.mxu0 0.0
          %290 = vmatpush.msra.mxu0 0.0
          %291 = vmatpush.msra.mxu0 0.0
          %292 = vmatpush.msra.mxu0 0.0
          %293 = vmatpush.msra.mxu0 %v276
          %294 = vmatpush.msra.mxu0 %v275
          %295 = vmatpush.msra.mxu0 %v274
          %296 = vmatpush.msra.mxu0 %v273
          %297 = vmatmul.f32.gmra.mxu0 %v279
          %v298 = vpop.f32.mrf.mxu0
          %v299 = vadd.f32 0.0, %v298
          %300 = vdwg.mxu0
          %vm301 = vcmask 130048
          %302 = vst.msk [vmem:[#allocation2] sm:$0xff] %vm301, %v299
          %304 = vrot.lane.b32.xlu0 %v299, 112
          %v305 = vpop.permute.xlu0 %304
          %vm307 = vcmask 7168
          %308 = vst.msk [vmem:[#allocation3] sm:$0xff] %vm307, %v305
          %v309 = vld [vmem:[%s263] sm:$0x1]
          %v310 = vld [vmem:[%s1] sm:$0xff]
          %v311 = vld [vmem:[%s1 + $0x8] sm:$0xff]
          %v312 = vld [vmem:[%s1 + $0x10] sm:$0xff]
          %v313 = vld [vmem:[%s1 + $0x18] sm:$0xff]
          %v315 = vsel %vm277, %v309, 0
          %317 = vmatpush.msra.mxu0 0.0
          %318 = vmatpush.msra.mxu0 0.0
          %319 = vmatpush.msra.mxu0 0.0
          %320 = vmatpush.msra.mxu0 0.0
          %321 = vmatpush.msra.mxu0 0.0
          %322 = vmatpush.msra.mxu0 0.0
          %323 = vmatpush.msra.mxu0 0.0
          %324 = vmatpush.msra.mxu0 0.0
          %325 = vmatpush.msra.mxu0 0.0
          %326 = vmatpush.msra.mxu0 0.0
          %327 = vmatpush.msra.mxu0 0.0
          %328 = vmatpush.msra.mxu0 0.0
          %329 = vmatpush.msra.mxu0 %v313
          %330 = vmatpush.msra.mxu0 %v312
          %331 = vmatpush.msra.mxu0 %v311
          %332 = vmatpush.msra.mxu0 %v310
          %333 = vmatmul.f32.gmra.mxu0 %v315
          %v334 = vpop.f32.mrf.mxu0
          %v335 = vadd.f32 0.0, %v334
          %336 = vdwg.mxu0
          %vm337 = vcmask 57344
          %338 = vst.msk [vmem:[#allocation4] sm:$0x1] %vm337, %v335
        $region44: #{tpu_custom_call.1} parent=39 // pred_fallthru
          _
        %s339 = smul.u32 %s24, 8
        %s340 = scalar_lea.vmem [#allocation3], %s339
        %v341 = vld [vmem:[%s340] sm:$0xff]
        %v342 = vld [vmem:[#allocation4] sm:$0x1]
        %344 = vset.pattern.permute.xlu0 0
        %345 = vperm.xlu0 %344, %v341
        %v346 = vpop.permute.xlu0 %345
        %v349 = vperm.slane %v342, 0
        %v351 = vadd.f32 %v346, %v349
        %vm352 = vcmp.ge.f32.partialorder %v351, 0.0
        %v353 = vmul.f32 %v351, 0.2
        %v354 = vsel %vm352, %v351, %v353
        %v355 = vld [vmem:[%s267] sm:$0xf]
        %v356 = vunpack.c.l.bf16 %v355
        %v357 = vadd.f32 %v354, %v356
        %vm358 = vcmask 64512
        %v359 = vsel %vm358, %v357, -inf
        %360 = vmax.xlane.f32.xlu0 %v359
        %v361 = vpop.xlane.xlu0 %360
        %v362 = vsub.f32 %v357, %v361
        %v363 = vmul.f32 %v362, 1.442695
        %v364 = vpow.pop %v363
        %v365 = vsel %vm358, %v364, 0.0
        %366 = vadd.xlane.f32.xlu0 %v365
        %v367 = vpop.xlane.xlu0 %366
        %v368 = vrcp.pop %v367
        %v369 = vmul.f32 %v364, %v368
        %v370 = vld [vmem:[#allocation2] sm:$0xff]
        %v372 = vsel %vm358, %v369, 0
        %374 = vmatpush.msra.mxu0 0.0
        %375 = vmatpush.msra.mxu0 0.0
        %376 = vmatpush.msra.mxu0 0.0
        %377 = vmatpush.msra.mxu0 0.0
        %378 = vmatpush.msra.mxu0 0.0
        %379 = vmatpush.msra.mxu0 0.0
        %380 = vmatpush.msra.mxu0 0.0
        %381 = vmatpush.msra.mxu0 0.0
        %382 = vmatpush.msra.mxu0 0.0
        %383 = vmatpush.msra.mxu0 0.0
        %384 = vmatpush.msra.mxu0 0.0
        %385 = vmatpush.msra.mxu0 0.0
        %386 = vmatpush.msra.mxu0 0.0
        %387 = vmatpush.msra.mxu0 0.0
        %388 = vmatpush.msra.mxu0 0.0
        %389 = vmatpush.msra.mxu0 %v370
        %390 = vmatmul.f32.gmra.mxu0 %v372
        %v391 = vpop.f32.mrf.mxu0
        %v392 = vadd.f32 0.0, %v391
        %393 = vdwg.mxu0
        %vm394 = vcmask 130048
        %395 = vst.msk [vmem:[%s255] sm:$0xff] %vm394, %v392
        %s396 = sand.u32 %s161, 1
        %s397 = scalar_lea.sflag [#allocation6], %s396
        %s398 = sand.u32 %s161, 1
        %s399 = smul.addr %s398, 8
        %s400 = scalar_lea.vmem [#allocation5], %s399
        // Predicated region
        $region45: #{tpu_custom_call.1} parent=39 // pred_check
          %p401 = pneg %p171
        $region46: #{tpu_custom_call.1} parent=39 // pred_check_branch
          %403 = sbr.rel (%p401) target = $region48
        $region47: #{tpu_custom_call.1} parent=39 // pred_region
          %405 = vsyncadd %s397, 0
          %s406 = sadd.s32 %s24, %s23
          %s407 = smul.addr %s406, 8
          %s408 = scalar_lea.hbm %s5, %s407
          %s410 = sshll.u32 %s400, 4
          %s411 = int_to_ptr.vmem [resolvable:$true] %s410
          %s412 = sshll.u32 %s408, 4
          %s413 = int_to_ptr.hbm [resolvable:$true] %s412
          %415 = dma.vmem_to_hbm [thread:$0]  %s411, 128, %s413, %s397
        $region48: #{tpu_custom_call.1} parent=39 // pred_fallthru
          _
      $region40: #{tpu_custom_call.1} parent=5 // pred_fallthru
        _
      %p416 = scmp.le.s32.totalorder 2, %s14
      // Predicated region
      $region49: #{tpu_custom_call.1} parent=5 // pred_check
        %p417 = pneg %p416
      $region50: #{tpu_custom_call.1} parent=5 // pred_check_branch
        %419 = sbr.rel (%p417) target = $region52
      $region51: #{tpu_custom_call.1} parent=5 // pred_region
        %s420 = ssub.s32 %s14, 2
        // Predicated region
        $region53: #{tpu_custom_call.1} parent=51 // pred_check
          %p421 = pneg %p177
        $region54: #{tpu_custom_call.1} parent=51 // pred_check_branch
          %423 = sbr.rel (%p421) target = $region56
        $region55: #{tpu_custom_call.1} parent=51 // pred_region
          %s424 = sand.u32 %s162, 1
          %s425 = scalar_lea.sflag [#allocation6], %s424
          %s426 = sand.u32 %s162, 1
          %s427 = smul.addr %s426, 8
          %s428 = scalar_lea.vmem [#allocation5], %s427
          %430 = dma.done %s425, 128
        $region56: #{tpu_custom_call.1} parent=51 // pred_fallthru
          _
      $region52: #{tpu_custom_call.1} parent=5 // pred_fallthru
        _
    $region6: #{tpu_custom_call.1} parent=1 // loop_footer
      %s18 = sadd.s32 1, %s14
    $region7: #{tpu_custom_call.1} parent=1 // loop_footer_branch
      %13 = sbr.rel target = $region3
    $region8: #{tpu_custom_call.1} parent=1 // loop_exit
      _
    %431 = vsyncpa [#allocation6], 1
    %s432 = scalar_lea.sflag [#allocation6], 1
    %433 = vsyncpa %s432, 1

</llo_original>
